<compile_context>
chip_gen: v5e
topology: v5e:2x2
jax: 0.10.0
libtpu: 0.0.40
codegen_flags: <defaults>
</compile_context>

<pallas_src>
import jax
import jax.numpy as jnp
from jax.experimental import pallas as pl
from jax.experimental.pallas import tpu as pltpu


def _round_up(n, m):
    return ((n + m - 1) // m) * m


# ---------------------------------------------------------------------------
# Kernels
# ---------------------------------------------------------------------------

def _glu_kernel_noacc(x_ref, w12_ref, w2_ref, o_ref):
    """f32 output: the output block itself is the accumulator (saves tm*E*4 VMEM)."""
    f = pl.program_id(1)
    tf = w2_ref.shape[0]
    x = x_ref[...]

    # Static ref slices are free; two MXU passes produce h (fc1) and g (gate).
    h = jnp.dot(x, w12_ref[:, :tf], preferred_element_type=jnp.float32)
    g = jnp.dot(x, w12_ref[:, tf:], preferred_element_type=jnp.float32)

    # silu in f32 (matches x.float()), cast back like .type_as(x), gate in x.dtype.
    act = (h * jax.nn.sigmoid(h)).astype(x.dtype)
    a = act * g.astype(x.dtype)

    contrib = jnp.dot(a, w2_ref[...], preferred_element_type=jnp.float32)

    @pl.when(f == 0)
    def _():
        o_ref[...] = contrib

    @pl.when(f > 0)
    def _():
        o_ref[...] += contrib


def _glu_kernel_acc(x_ref, w12_ref, w2_ref, o_ref, acc_ref):
    """Non-f32 output: carry an f32 accumulator across the streamed F axis."""
    f = pl.program_id(1)
    tf = w2_ref.shape[0]

    @pl.when(f == 0)
    def _():
        acc_ref[...] = jnp.zeros_like(acc_ref)

    x = x_ref[...]
    h = jnp.dot(x, w12_ref[:, :tf], preferred_element_type=jnp.float32)
    g = jnp.dot(x, w12_ref[:, tf:], preferred_element_type=jnp.float32)
    act = (h * jax.nn.sigmoid(h)).astype(x.dtype)
    a = act * g.astype(x.dtype)
    acc_ref[...] += jnp.dot(a, w2_ref[...], preferred_element_type=jnp.float32)

    @pl.when(f == pl.num_programs(1) - 1)
    def _():
        o_ref[...] = acc_ref[...].astype(o_ref.dtype)


# ---------------------------------------------------------------------------
# Weight preparation (one-time, at init)
# ---------------------------------------------------------------------------

def prepare_glu_weights(w_fc1, w_gate, w_fc2, *, tf=512, dtype=None,
                        resident_bytes_limit=16 * 1024 * 1024):
    """One-time weight preparation (call at init, not per forward).

    w_fc1, w_gate: (ffn_dim, embed_dim); w_fc2: (embed_dim, ffn_dim)  [PyTorch layout]
    dtype: optional storage/compute dtype (e.g. jnp.bfloat16 for MXU-native matmuls).

    Returns:
      w12 : (E, 2*F_pad) strip-interleaved [fc1_strip_f | gate_strip_f] per F-strip
      w2t : (F_pad, E)   fc2 transposed (F zero-padded to a multiple of the strip)
      tf  : effective F-strip size (== F_pad when weights fit resident)
    """
    F_dim, E = w_fc1.shape
    if dtype is not None:
        w_fc1 = w_fc1.astype(dtype)
        w_gate = w_gate.astype(dtype)
        w_fc2 = w_fc2.astype(dtype)
    w_bytes = jnp.dtype(w_fc1.dtype).itemsize
    total_w_bytes = 3 * E * F_dim * w_bytes

    if total_w_bytes <= resident_bytes_limit or F_dim <= tf:
        # Single strip: weight block indices never change -> DMA'd once, resident.
        tf_eff = F_dim
        f_pad = F_dim
    else:
        # Streamed F axis: strip size must be a multiple of 128 (lane-aligned).
        tf_eff = max(128, (tf // 128) * 128)
        f_pad = _round_up(F_dim, tf_eff)

    pad = f_pad - F_dim
    if pad:
        # Zero columns of W1/Wg and zero rows of W2t contribute silu(0)*0 = 0.
        w_fc1 = jnp.pad(w_fc1, ((0, pad), (0, 0)))
        w_gate = jnp.pad(w_gate, ((0, pad), (0, 0)))
        w_fc2 = jnp.pad(w_fc2, ((0, 0), (0, pad)))

    nf = f_pad // tf_eff
    w1t = w_fc1.T.reshape(E, nf, tf_eff)
    wgt = w_gate.T.reshape(E, nf, tf_eff)
    # Strip f of the fused weight = [fc1 columns of strip f | gate columns of strip f]
    w12 = jnp.concatenate([w1t, wgt], axis=2).reshape(E, nf * 2 * tf_eff)
    w2t = w_fc2.T  # (F_pad, E)
    return w12, w2t, tf_eff


# ---------------------------------------------------------------------------
# Tile / VMEM heuristics
# ---------------------------------------------------------------------------

def _device_defaults():
    """(tm_max, vmem_limit_bytes) per TPU generation."""
    kind = ""
    try:
        kind = jax.devices()[0].device_kind.lower()
    except Exception:
        pass
    if "v5" in kind:
        return 256, 96 * 1024 * 1024     # v5e: knee ~240 FLOP/B, 128 MiB VMEM
    if "v6" in kind:
        return 768, 96 * 1024 * 1024     # v6e: knee ~680 FLOP/B, 128 MiB VMEM
    return 512, 48 * 1024 * 1024         # v7x / unknown: only 64 MiB VMEM per TC


def _pick_tm(M, E, tf, w_bytes, x_bytes, out_bytes, use_acc, vmem_budget, tm_max):
    # Double-buffered weight strips: fused fc1/gate (E, 2*tf) + fc2^T (tf, E).
    w_blk = 2 * (E * 2 * tf + tf * E) * w_bytes
    # Per-row bytes: x tile (double-buffered) + output tile (double-buffered) + acc.
    per_tm = 2 * E * x_bytes + 2 * E * out_bytes + (E * 4 if use_acc else 0)
    avail = max(vmem_budget - w_blk, per_tm * 8)
    tm_cap = max(8, (avail // per_tm) // 8 * 8)
    tm = int(min(tm_max, tm_cap, _round_up(M, 8)))
    # Ensure grid[0] >= 2 whenever possible so both v7x TensorCores get work.
    if tm >= M and M > 8:
        tm = _round_up((M + 1) // 2, 8)
    return tm


# ---------------------------------------------------------------------------
# Forward wrapper
# ---------------------------------------------------------------------------

def glu_forward(x, w12, w2t, tf, *, tm=None, vmem_limit_bytes=None):
    """x: (..., embed_dim). w12/w2t/tf come from prepare_glu_weights."""
    orig_shape = x.shape
    E = orig_shape[-1]
    f_pad = w2t.shape[0]
    assert w12.shape == (E, 2 * f_pad)
    assert f_pad % tf == 0
    nf = f_pad // tf

    out_dtype = x.dtype
    compute_dtype = w12.dtype

    x2d = x.reshape(-1, E)
    if x2d.dtype != compute_dtype:
        # Keep both matmul operands in the same (weight) dtype so the MXU takes
        # the bf16-native path instead of silently promoting to f32.
        x2d = x2d.astype(compute_dtype)
    M = x2d.shape[0]

    tm_max_default, vmem_default = _device_defaults()
    if vmem_limit_bytes is None:
        vmem_limit_bytes = vmem_default
    tm_max = tm if tm is not None else tm_max_default

    use_acc = jnp.dtype(out_dtype) != jnp.dtype(jnp.float32)
    w_bytes = jnp.dtype(compute_dtype).itemsize
    out_bytes = jnp.dtype(out_dtype).itemsize
    tm_eff = _pick_tm(M, E, tf, w_bytes, w_bytes, out_bytes, use_acc,
                      int(vmem_limit_bytes * 0.7), tm_max)

    M_pad = _round_up(M, tm_eff)
    if M_pad != M:
        x2d = jnp.pad(x2d, ((0, M_pad - M), (0, 0)))

    grid = (M_pad // tm_eff, nf)
    kernel = _glu_kernel_acc if use_acc else _glu_kernel_noacc
    scratch = [pltpu.VMEM((tm_eff, E), jnp.float32)] if use_acc else []

    out = pl.pallas_call(
        kernel,
        out_shape=jax.ShapeDtypeStruct((M_pad, E), out_dtype),
        grid_spec=pltpu.PrefetchScalarGridSpec(
            num_scalar_prefetch=0,
            grid=grid,
            in_specs=[
                pl.BlockSpec((tm_eff, E), lambda i, f: (i, 0)),   # x row tile
                pl.BlockSpec((E, 2 * tf), lambda i, f: (0, f)),   # fused fc1/gate strip
                pl.BlockSpec((tf, E), lambda i, f: (f, 0)),       # fc2^T strip
            ],
            out_specs=pl.BlockSpec((tm_eff, E), lambda i, f: (i, 0)),
            scratch_shapes=scratch,
        ),
        compiler_params=pltpu.CompilerParams(
            dimension_semantics=("parallel", "arbitrary"),
            vmem_limit_bytes=vmem_limit_bytes,
        ),
    )(x2d, w12, w2t)

    if M_pad != M:
        out = out[:M]
    return out.reshape(orig_shape)


# ---------------------------------------------------------------------------
# Pure-JAX reference
# ---------------------------------------------------------------------------

def glu_reference(x, w_fc1, w_gate, w_fc2):
    x_shape = x.shape
    x2d = x.reshape(-1, x_shape[-1])
    g = x2d @ w_gate.T
    h = x2d @ w_fc1.T
    a = (jax.nn.silu(h.astype(jnp.float32))).astype(x.dtype) * g
    y = a @ w_fc2.T
    return y.reshape(x_shape)


if __name__ == "__main__":
    key = jax.random.PRNGKey(0)
    kx, k1, kg, k2 = jax.random.split(key, 4)

    # --- Test 1: f32, weights resident (single strip), output doubles as accumulator.
    batch, seq, embed_dim, ffn_dim = 2, 8, 32, 64
    x = jax.random.normal(kx, (batch, seq, embed_dim), dtype=jnp.float32)
    # PyTorch Linear layout: (out_features, in_features).
    w_fc1 = jax.random.normal(k1, (ffn_dim, embed_dim), dtype=jnp.float32) * 0.05
    w_gate = jax.random.normal(kg, (ffn_dim, embed_dim), dtype=jnp.float32) * 0.05
    w_fc2 = jax.random.normal(k2, (embed_dim, ffn_dim), dtype=jnp.float32) * 0.05

    w12, w2t, tf = prepare_glu_weights(w_fc1, w_gate, w_fc2)
    y = jax.block_until_ready(glu_forward(x, w12, w2t, tf))
    y_ref = glu_reference(x, w_fc1, w_gate, w_fc2)
    assert y.shape == x.shape
    assert jnp.allclose(y, y_ref, atol=2e-5, rtol=2e-5), "f32 mismatch vs reference"

    # Ragged M (batch*seq not a multiple of 8) exercises the row-padding path.
    x_rag = jax.random.normal(kx, (3, 5, embed_dim), dtype=jnp.float32)
    y_rag = jax.block_until_ready(glu_forward(x_rag, w12, w2t, tf))
    y_rag_ref = glu_reference(x_rag, w_fc1, w_gate, w_fc2)
    assert y_rag.shape == x_rag.shape
    assert jnp.allclose(y_rag, y_rag_ref, atol=2e-5, rtol=2e-5), "ragged mismatch"

    # --- Test 2: bf16 weights/activations, streamed F axis with F-padding + acc scratch.
    E2, F2 = 128, 320  # F padded to 384 = 3 strips of tf=128
    kx2, k12, kg2, k22 = jax.random.split(jax.random.PRNGKey(1), 4)
    x2 = jax.random.normal(kx2, (4, 8, E2), dtype=jnp.bfloat16)
    w1b = jax.random.normal(k12, (F2, E2), dtype=jnp.float32) * 0.05
    wgb = jax.random.normal(kg2, (F2, E2), dtype=jnp.float32) * 0.05
    w2b = jax.random.normal(k22, (E2, F2), dtype=jnp.float32) * 0.05

    w12b, w2tb, tfb = prepare_glu_weights(
        w1b, wgb, w2b, tf=128, dtype=jnp.bfloat16, resident_bytes_limit=0)
    y2 = jax.block_until_ready(glu_forward(x2, w12b, w2tb, tfb))
    y2_ref = glu_reference(x2, w1b.astype(jnp.bfloat16), wgb.astype(jnp.bfloat16),
                           w2b.astype(jnp.bfloat16))
    assert y2.shape == x2.shape and y2.dtype == x2.dtype
    assert jnp.allclose(y2.astype(jnp.float32), y2_ref.astype(jnp.float32),
                        atol=5e-2, rtol=5e-2), "bf16 mismatch vs reference"

    print("KERNEL_OK")
</pallas_src>

<mosaic_0001>
module attributes {stable_mosaic.version = 11 : i64} {
  func.func @_glu_kernel_noacc(%arg0: i32, %arg1: i32, %arg2: memref<8x32xf32, #tpu.memory_space<vmem>>, %arg3: memref<32x128xf32, #tpu.memory_space<vmem>>, %arg4: memref<64x32xf32, #tpu.memory_space<vmem>>, %arg5: memref<8x32xf32, #tpu.memory_space<vmem>>) attributes {dimension_semantics = [#tpu.dimension_semantics<parallel>, #tpu.dimension_semantics<arbitrary>], iteration_bounds = array<i64: 2, 1>, scalar_prefetch = 0 : i64, scratch_operands = 0 : i64, tpu.core_type = #tpu.core_type<tc>, window_params = [{transform_indices = @transform_0, window_bounds = array<i64: 8, 32>}, {transform_indices = @transform_1, window_bounds = array<i64: 32, 128>}, {transform_indices = @transform_2, window_bounds = array<i64: 64, 32>}, {transform_indices = @transform_3, window_bounds = array<i64: 8, 32>}]} {
    %c0 = arith.constant 0 : index
    %c0_0 = arith.constant 0 : index
    %0 = vector.load %arg2[%c0, %c0_0] : memref<8x32xf32, #tpu.memory_space<vmem>>, vector<8x32xf32>
    %c0_1 = arith.constant 0 : index
    %c0_2 = arith.constant 0 : index
    %1 = vector.load %arg3[%c0_1, %c0_2] : memref<32x128xf32, #tpu.memory_space<vmem>>, vector<32x64xf32>
    %cst = arith.constant dense<0.000000e+00> : vector<8x64xf32>
    %2 = tpu.matmul %0, %1, %cst {dimension_numbers = #tpu.dot_dimension_numbers<[1], [0], [0], [1], [0, 0, 1, 1], [], []>} : vector<8x32xf32>, vector<32x64xf32>, vector<8x64xf32> -> vector<8x64xf32>
    %c0_3 = arith.constant 0 : index
    %c64 = arith.constant 64 : index
    %3 = vector.load %arg3[%c0_3, %c64] : memref<32x128xf32, #tpu.memory_space<vmem>>, vector<32x64xf32>
    %cst_4 = arith.constant dense<0.000000e+00> : vector<8x64xf32>
    %4 = tpu.matmul %0, %3, %cst_4 {dimension_numbers = #tpu.dot_dimension_numbers<[1], [0], [0], [1], [0, 0, 1, 1], [], []>} : vector<8x32xf32>, vector<32x64xf32>, vector<8x64xf32> -> vector<8x64xf32>
    %5 = arith.negf %2 : vector<8x64xf32>
    %6 = math.exp %5 : vector<8x64xf32>
    %cst_5 = arith.constant 1.000000e+00 : f32
    %7 = vector.broadcast %cst_5 : f32 to vector<8x64xf32>
    %8 = arith.addf %7, %6 : vector<8x64xf32>
    %9 = arith.divf %7, %8 : vector<8x64xf32>
    %10 = arith.mulf %2, %9 : vector<8x64xf32>
    %11 = arith.mulf %10, %4 : vector<8x64xf32>
    %c0_6 = arith.constant 0 : index
    %c0_7 = arith.constant 0 : index
    %12 = vector.load %arg4[%c0_6, %c0_7] : memref<64x32xf32, #tpu.memory_space<vmem>>, vector<64x32xf32>
    %cst_8 = arith.constant dense<0.000000e+00> : vector<8x32xf32>
    %13 = tpu.matmul %11, %12, %cst_8 {dimension_numbers = #tpu.dot_dimension_numbers<[1], [0], [0], [1], [0, 0, 1, 1], [], []>} : vector<8x64xf32>, vector<64x32xf32>, vector<8x32xf32> -> vector<8x32xf32>
    %c0_i32 = arith.constant 0 : i32
    %14 = arith.cmpi eq, %arg1, %c0_i32 : i32
    %15 = arith.extui %14 : i1 to i32
    %c0_i32_9 = arith.constant 0 : i32
    %16 = arith.cmpi ne, %15, %c0_i32_9 : i32
    scf.if %16 {
      %c0_12 = arith.constant 0 : index
      %c0_13 = arith.constant 0 : index
      %20 = vector.load %arg5[%c0_12, %c0_13] : memref<8x32xf32, #tpu.memory_space<vmem>>, vector<8x32xf32>
      tpu.vector_store %arg5[%c0_12, %c0_13], %13 {strides = array<i32>} : memref<8x32xf32, #tpu.memory_space<vmem>>, vector<8x32xf32>,
    } else {
    }
    %c0_i32_10 = arith.constant 0 : i32
    %17 = arith.cmpi sgt, %arg1, %c0_i32_10 : i32
    %18 = arith.extui %17 : i1 to i32
    %c0_i32_11 = arith.constant 0 : i32
    %19 = arith.cmpi ne, %18, %c0_i32_11 : i32
    scf.if %19 {
      %c0_12 = arith.constant 0 : index
      %c0_13 = arith.constant 0 : index
      %20 = vector.load %arg5[%c0_12, %c0_13] : memref<8x32xf32, #tpu.memory_space<vmem>>, vector<8x32xf32>
      %21 = arith.addf %20, %13 : vector<8x32xf32>
      %c0_14 = arith.constant 0 : index
      %c0_15 = arith.constant 0 : index
      %22 = vector.load %arg5[%c0_14, %c0_15] : memref<8x32xf32, #tpu.memory_space<vmem>>, vector<8x32xf32>
      tpu.vector_store %arg5[%c0_14, %c0_15], %21 {strides = array<i32>} : memref<8x32xf32, #tpu.memory_space<vmem>>, vector<8x32xf32>,
    } else {
    }
    return
  }
  func.func @transform_0(%arg0: i32, %arg1: i32) -> (i32, i32) {
    %c0_i32 = arith.constant 0 : i32
    %c0_i32_0 = arith.constant 0 : i32
    return %arg0, %c0_i32 : i32, i32
  }
  func.func @transform_1(%arg0: i32, %arg1: i32) -> (i32, i32) {
    %c0_i32 = arith.constant 0 : i32
    %c0_i32_0 = arith.constant 0 : i32
    return %c0_i32, %arg1 : i32, i32
  }
  func.func @transform_2(%arg0: i32, %arg1: i32) -> (i32, i32) {
    %c0_i32 = arith.constant 0 : i32
    %c0_i32_0 = arith.constant 0 : i32
    return %arg1, %c0_i32 : i32, i32
  }
  func.func @transform_3(%arg0: i32, %arg1: i32) -> (i32, i32) {
    %c0_i32 = arith.constant 0 : i32
    %c0_i32_0 = arith.constant 0 : i32
    return %arg0, %c0_i32 : i32, i32
  }
}

</mosaic_0001>

<llo_original>
// kernel: tpu_custom_call.1
$region0: #{tpu_custom_call.1}
  #allocation0 [shape = 'u32[]', space=smem, size = 0x4, offset = 0x4, fixed_abs, tag = 'smem constant byte address 0x4 - core index']
  #allocation1 [shape = 'u32[72,128]{1,0:T(1,128)}', space=vmem, size = 0x9000, scoped, tag = 'internal scratch']
  %s0 = inlined_call_operand.vmem [shape: f32[16,32], index: 0, kind: input, shape index: {}]
  %s1 = inlined_call_operand.vmem [shape: f32[32,128], index: 1, kind: input, shape index: {}]
  %s2 = inlined_call_operand.vmem [shape: f32[64,32], index: 2, kind: input, shape index: {}]
  %s3 = inlined_call_operand.hbm [shape: f32[16,32], index: 3, kind: output, shape index: {}]
  %s4 = sld [smem:[#allocation0]]
  $region53: #{tpu_custom_call.1} parent=0
    _
  %s6 = ssub.s32 1, %s4
  %s7 = scalar_select 0, %s6, %s4
  $region1: #{tpu_custom_call.1} parent=0
    #allocation2 [shape = 'u8[8192]{0}', space=vmem, size = 0x2000, scoped, tag = 'output window, operand 0']
    #allocation3 [shape = 's32[2]{0}', space=sflag, size = 0x8, scoped, tag = 'scoped memory for tpu_custom_call.1']
    %8 = vsyncpa [#allocation3], 0
    %s9 = scalar_lea.sflag [#allocation3], 1
    %10 = vsyncpa %s9, 0
    loop: start=0, step=1, limit=4
    $region2: #{tpu_custom_call.1} parent=1 // loop_pre_header
      _
    $region3: #{tpu_custom_call.1} parent=1 // loop_header
      %s12 = sphi 0, %s16
      %p13 = scmp.ge.s32.totalorder %s12, 4
      %s19 = sphi 0, %s31
      %s20 = sphi 0, %s27
      %s21 = sphi 0, %s19
      %s22 = sphi 0, %s20
      %s23 = sphi 0, %s21
      %s24 = sphi 0, %s22
      %s34 = sphi 0, %s36
      %s37 = sphi 0, %s34
      %s38 = sphi 0, %s37
      %s54 = sphi 0, %s38
      %s60 = sphi 0, %s62
      %s63 = sphi 0, %s60
      %s64 = sphi 0, %s63
      %s80 = sphi 0, %s64
      %s86 = sphi 0, %s88
      %s89 = sphi 0, %s86
      %s90 = sphi 0, %s89
      %s106 = sphi 0, %s90
      %s112 = sphi 0, %s114
      %s115 = sphi 0, %s112
      %s116 = sphi 0, %s115
      %s132 = sphi 0, %s116
    $region4: #{tpu_custom_call.1} parent=1 // loop_header_branch
      %15 = sbr.rel (%p13) target = $region8
    $region5: #{tpu_custom_call.1} parent=1 // loop_body
      %s17 = ssub.s32 %s12, 1
      %s18 = ssub.s32 %s12, 2
      %s25 = sadd.s32 1, %s20
      %p26 = scmp.ge.s32.totalorder %s25, 1
      %s27 = scalar_select %p26, 0, %s25
      %s28 = sadd.s32 1, %s19
      %s29 = scalar_select %p26, %s28, %s19
      %p30 = scmp.ge.s32.totalorder %s29, 2
      %s31 = scalar_select %p30, 0, %s29
      %s32 = ssub.s32 %s19, %s31
      %p33 = scmp.eq.s32.totalorder %s32, 0
      %s35 = sadd.s32 %s34, 1
      %s36 = scalar_select %p33, %s34, %s35
      %p39 = pneg %p33
      %p40 = scmp.eq.s32.totalorder %s12, 1
      %p41 = por %p39, %p40
      %p42 = scmp.ne.s32.totalorder %s34, %s37
      %p43 = scmp.eq.s32.totalorder %s12, 0
      %p44 = por %p42, %p43
      %p45 = scmp.ne.s32.totalorder %s34, %s37
      %p46 = scmp.eq.s32.totalorder %s17, 1
      %p47 = por %p45, %p46
      %p48 = scmp.ne.s32.totalorder %s37, %s38
      %p49 = scmp.eq.s32.totalorder %s17, 0
      %p50 = por %p48, %p49
      %p51 = scmp.ne.s32.totalorder %s37, %s38
      %p52 = scmp.eq.s32.totalorder %s18, 1
      %p53 = por %p51, %p52
      %p55 = scmp.ne.s32.totalorder %s38, %s54
      %p56 = scmp.eq.s32.totalorder %s18, 0
      %p57 = por %p55, %p56
      %s58 = ssub.s32 %s20, %s27
      %p59 = scmp.eq.s32.totalorder %s58, 0
      %s61 = sadd.s32 %s60, 1
      %s62 = scalar_select %p59, %s60, %s61
      %p65 = pneg %p59
      %p66 = scmp.eq.s32.totalorder %s12, 1
      %p67 = por %p65, %p66
      %p68 = scmp.ne.s32.totalorder %s60, %s63
      %p69 = scmp.eq.s32.totalorder %s12, 0
      %p70 = por %p68, %p69
      %p71 = scmp.ne.s32.totalorder %s60, %s63
      %p72 = scmp.eq.s32.totalorder %s17, 1
      %p73 = por %p71, %p72
      %p74 = scmp.ne.s32.totalorder %s63, %s64
      %p75 = scmp.eq.s32.totalorder %s17, 0
      %p76 = por %p74, %p75
      %p77 = scmp.ne.s32.totalorder %s63, %s64
      %p78 = scmp.eq.s32.totalorder %s18, 1
      %p79 = por %p77, %p78
      %p81 = scmp.ne.s32.totalorder %s64, %s80
      %p82 = scmp.eq.s32.totalorder %s18, 0
      %p83 = por %p81, %p82
      %s84 = ssub.s32 %s20, %s27
      %p85 = scmp.eq.s32.totalorder %s84, 0
      %s87 = sadd.s32 %s86, 1
      %s88 = scalar_select %p85, %s86, %s87
      %p91 = pneg %p85
      %p92 = scmp.eq.s32.totalorder %s12, 1
      %p93 = por %p91, %p92
      %p94 = scmp.ne.s32.totalorder %s86, %s89
      %p95 = scmp.eq.s32.totalorder %s12, 0
      %p96 = por %p94, %p95
      %p97 = scmp.ne.s32.totalorder %s86, %s89
      %p98 = scmp.eq.s32.totalorder %s17, 1
      %p99 = por %p97, %p98
      %p100 = scmp.ne.s32.totalorder %s89, %s90
      %p101 = scmp.eq.s32.totalorder %s17, 0
      %p102 = por %p100, %p101
      %p103 = scmp.ne.s32.totalorder %s89, %s90
      %p104 = scmp.eq.s32.totalorder %s18, 1
      %p105 = por %p103, %p104
      %p107 = scmp.ne.s32.totalorder %s90, %s106
      %p108 = scmp.eq.s32.totalorder %s18, 0
      %p109 = por %p107, %p108
      %s110 = ssub.s32 %s19, %s31
      %p111 = scmp.eq.s32.totalorder %s110, 0
      %s113 = sadd.s32 %s112, 1
      %s114 = scalar_select %p111, %s112, %s113
      %p117 = pneg %p111
      %p118 = scmp.eq.s32.totalorder %s12, 1
      %p119 = por %p117, %p118
      %p120 = scmp.ne.s32.totalorder %s112, %s115
      %p121 = scmp.eq.s32.totalorder %s12, 0
      %p122 = por %p120, %p121
      %p123 = scmp.ne.s32.totalorder %s112, %s115
      %p124 = scmp.eq.s32.totalorder %s17, 1
      %p125 = por %p123, %p124
      %p126 = scmp.ne.s32.totalorder %s115, %s116
      %p127 = scmp.eq.s32.totalorder %s17, 0
      %p128 = por %p126, %p127
      %p129 = scmp.ne.s32.totalorder %s115, %s116
      %p130 = scmp.eq.s32.totalorder %s18, 1
      %p131 = por %p129, %p130
      %p133 = scmp.ne.s32.totalorder %s116, %s132
      %p134 = scmp.eq.s32.totalorder %s18, 0
      %p135 = por %p133, %p134
      %p136 = scmp.le.s32.totalorder 1, %s12
      %p137 = scmp.lt.s32.totalorder %s12, 3
      %p138 = pnand %p136, %p137
      %p139 = pneg %p138
      // Predicated region
      $region9: #{tpu_custom_call.1} parent=5 // pred_check
        _
      $region10: #{tpu_custom_call.1} parent=5 // pred_check_branch
        %141 = sbr.rel (%p138) target = $region12
      $region11: #{tpu_custom_call.1} parent=5 // pred_region
        %s142 = ssub.s32 %s12, 1
        // Predicated region
        $region13: #{tpu_custom_call.1} parent=11 // pred_check
          %p143 = pneg %p76
        $region14: #{tpu_custom_call.1} parent=11 // pred_check_branch
          %145 = sbr.rel (%p143) target = $region16
        $region15: #{tpu_custom_call.1} parent=11 // pred_region
          %p146 = scmp.lt.s32.totalorder %s22, 0
          %s147 = scalar_select %p146, %s22, 0
          %s148 = smul.addr %s147, 8
          %s149 = scalar_lea.vmem %s1, %s148
        $region16: #{tpu_custom_call.1} parent=11 // pred_fallthru
          _
        // Predicated region
        $region17: #{tpu_custom_call.1} parent=11 // pred_check
          %p150 = pneg %p102
        $region18: #{tpu_custom_call.1} parent=11 // pred_check_branch
          %152 = sbr.rel (%p150) target = $region20
        $region19: #{tpu_custom_call.1} parent=11 // pred_region
          %s153 = smul.u32 8, %s22
          %p154 = scmp.lt.s32.totalorder %s153, 7
          %s155 = scalar_select %p154, %s153, 7
          %s156 = smul.addr %s155, 8
          %s157 = scalar_lea.vmem %s2, %s156
          %s158 = smul.u32 8, %s22
        $region20: #{tpu_custom_call.1} parent=11 // pred_fallthru
          _
      $region12: #{tpu_custom_call.1} parent=5 // pred_fallthru
        _
      %p159 = scmp.lt.s32.totalorder %s12, 2
      // Predicated region
      $region21: #{tpu_custom_call.1} parent=5 // pred_check
        %p160 = pneg %p159
      $region22: #{tpu_custom_call.1} parent=5 // pred_check_branch
        %162 = sbr.rel (%p160) target = $region24
      $region23: #{tpu_custom_call.1} parent=5 // pred_region
        // Predicated region
        $region25: #{tpu_custom_call.1} parent=23 // pred_check
          %p163 = pneg %p44
        $region26: #{tpu_custom_call.1} parent=23 // pred_check_branch
          %165 = sbr.rel (%p163) target = $region28
        $region27: #{tpu_custom_call.1} parent=23 // pred_region
          %p166 = scmp.lt.s32.totalorder %s19, 1
          %s167 = scalar_select %p166, %s19, 1
          %s168 = smul.addr %s167, 8
          %s169 = scalar_lea.vmem %s0, %s168
        $region28: #{tpu_custom_call.1} parent=23 // pred_fallthru
          _
      $region24: #{tpu_custom_call.1} parent=5 // pred_fallthru
        _
      %p170 = scmp.le.s32.totalorder 1, %s12
      %p171 = scmp.lt.s32.totalorder %s12, 3
      %p172 = pnand %p170, %p171
      %p173 = pneg %p172
      // Predicated region
      $region29: #{tpu_custom_call.1} parent=5 // pred_check
        _
      $region30: #{tpu_custom_call.1} parent=5 // pred_check_branch
        %175 = sbr.rel (%p172) target = $region32
      $region31: #{tpu_custom_call.1} parent=5 // pred_region
        %s176 = ssub.s32 %s12, 1
        %p177 = scmp.lt.s32.totalorder %s21, 1
        %s178 = scalar_select %p177, %s21, 1
        %s179 = smul.addr %s178, 8
        %s180 = scalar_lea.vmem %s0, %s179
        %p181 = pneg %p50
        %p182 = pneg %p47
        %p183 = scmp.lt.s32.totalorder %s22, 0
        %s184 = scalar_select %p183, %s22, 0
        %s185 = smul.addr %s184, 8
        %s186 = scalar_lea.vmem %s1, %s185
        %p187 = pneg %p76
        %p188 = pneg %p73
        %s189 = smul.u32 8, %s22
        %p190 = scmp.lt.s32.totalorder %s189, 7
        %s191 = scalar_select %p190, %s189, 7
        %s192 = smul.addr %s191, 8
        %s193 = scalar_lea.vmem %s2, %s192
        %p194 = pneg %p102
        %p195 = pneg %p99
        %p196 = pneg %p128
        %p197 = pneg %p125
        %s198 = sand.u32 %s115, 1
        %s199 = scalar_lea.sflag [#allocation3], %s198
        %s200 = sand.u32 %s115, 1
        %s201 = smul.addr %s200, 8
        %s202 = scalar_lea.vmem [#allocation2], %s201
        %p203 = scmp.lt.s32.totalorder %s21, 1
        %s204 = scalar_select %p203, %s21, 1
        %s205 = smul.addr %s204, 8
        %s206 = scalar_lea.vmem %s0, %s205
        %p207 = scmp.lt.s32.totalorder %s22, 0
        %s208 = scalar_select %p207, %s22, 0
        %s209 = smul.addr %s208, 8
        %s210 = scalar_lea.vmem %s1, %s209
        %s211 = smul.u32 8, %s22
        %p212 = scmp.lt.s32.totalorder %s211, 7
        %s213 = scalar_select %p212, %s211, 7
        %s214 = smul.addr %s213, 8
        %s215 = scalar_lea.vmem %s2, %s214
        %s216 = smul.u32 8, %s22
        %v217 = vld [vmem:[%s206] sm:$0xff]
        %v218 = vld [vmem:[%s210] sm:$0xff]
        %v219 = vld [vmem:[%s210 + $0x8] sm:$0xff]
        %v220 = vld [vmem:[%s210 + $0x10] sm:$0xff]
        %v221 = vld [vmem:[%s210 + $0x18] sm:$0xff]
        %vm222 = vcmask 261120
        %v224 = vsel %vm222, %v217, 0
        %226 = vmatpush.msra.mxu0 0.0
        %227 = vmatpush.msra.mxu0 0.0
        %228 = vmatpush.msra.mxu0 0.0
        %229 = vmatpush.msra.mxu0 0.0
        %230 = vmatpush.msra.mxu0 0.0
        %231 = vmatpush.msra.mxu0 0.0
        %232 = vmatpush.msra.mxu0 0.0
        %233 = vmatpush.msra.mxu0 0.0
        %234 = vmatpush.msra.mxu0 0.0
        %235 = vmatpush.msra.mxu0 0.0
        %236 = vmatpush.msra.mxu0 0.0
        %237 = vmatpush.msra.mxu0 0.0
        %238 = vmatpush.msra.mxu0 %v221
        %239 = vmatpush.msra.mxu0 %v220
        %240 = vmatpush.msra.mxu0 %v219
        %241 = vmatpush.msra.mxu0 %v218
        %242 = vmatmul.f32.gmra.mxu0 %v224
        %v243 = vpop.f32.mrf.mxu0
        %v244 = vadd.f32 0.0, %v243
        %245 = vdwg.mxu0
        %250 = vrot.lane.b32.xlu0 %v218, 64
        %v251 = vpop.permute.xlu0 %250
        %252 = vrot.lane.b32.xlu0 %v219, 64
        %v253 = vpop.permute.xlu0 %252
        %254 = vrot.lane.b32.xlu0 %v220, 64
        %v255 = vpop.permute.xlu0 %254
        %256 = vrot.lane.b32.xlu0 %v221, 64
        %v257 = vpop.permute.xlu0 %256
        %262 = vmatpush.msra.mxu0 0.0
        %263 = vmatpush.msra.mxu0 0.0
        %264 = vmatpush.msra.mxu0 0.0
        %265 = vmatpush.msra.mxu0 0.0
        %266 = vmatpush.msra.mxu0 0.0
        %267 = vmatpush.msra.mxu0 0.0
        %268 = vmatpush.msra.mxu0 0.0
        %269 = vmatpush.msra.mxu0 0.0
        %270 = vmatpush.msra.mxu0 0.0
        %271 = vmatpush.msra.mxu0 0.0
        %272 = vmatpush.msra.mxu0 0.0
        %273 = vmatpush.msra.mxu0 0.0
        %274 = vmatpush.msra.mxu0 %v257
        %275 = vmatpush.msra.mxu0 %v255
        %276 = vmatpush.msra.mxu0 %v253
        %277 = vmatpush.msra.mxu0 %v251
        %278 = vmatmul.f32.gmra.mxu0 %v224
        %v279 = vpop.f32.mrf.mxu0
        %v280 = vadd.f32 0.0, %v279
        %281 = vdwg.mxu0
        %v282 = vxor.u32 %v244, 2147483648
        %v283 = vmul.f32 %v282, 1.442695
        %v284 = vpow.pop %v283
        %v285 = vadd.f32 %v284, 1.0
        %v286 = vrcp.pop %v285
        %v287 = vmul.f32 %v285, %v286
        %v288 = vsub.f32 1.0, %v287
        %v289 = vmul.f32 %v286, %v288
        %v290 = vadd.f32 %v286, %v289
        %vm291 = vweird.f32 %v285
        %vm292 = vweird.f32 %v286
        %vm293 = vmor %vm291, %vm292
        %v294 = vsel %vm293, %v286, %v290
        %v295 = vand.u32 2147483647, %v285
        %vm296 = vcmp.eq.f32.partialorder %v295, 8.507059e+37
        %v297 = vand.u32 %v285, 2147483648
        %v298 = vor.u32 1.1754944e-38, %v297
        %v299 = vsel %vm296, %v298, %v294
        %v300 = vmul.f32 1.0, %v299
        %v301 = vmul.f32 %v244, %v300
        %v302 = vmul.f32 %v301, %v280
        %v303 = vld [vmem:[%s215] sm:$0xff]
        %v304 = vld [vmem:[%s215 + $0x8] sm:$0xff]
        %v305 = vld [vmem:[%s215 + $0x10] sm:$0xff]
        %v306 = vld [vmem:[%s215 + $0x18] sm:$0xff]
        %v307 = vld [vmem:[%s215 + $0x20] sm:$0xff]
        %v308 = vld [vmem:[%s215 + $0x28] sm:$0xff]
        %v309 = vld [vmem:[%s215 + $0x30] sm:$0xff]
        %v310 = vld [vmem:[%s215 + $0x38] sm:$0xff]
        %vm311 = vcmask 523264
        %v313 = vsel %vm311, %v302, 0
        %315 = vmatpush.msra.mxu0 0.0
        %316 = vmatpush.msra.mxu0 0.0
        %317 = vmatpush.msra.mxu0 0.0
        %318 = vmatpush.msra.mxu0 0.0
        %319 = vmatpush.msra.mxu0 0.0
        %320 = vmatpush.msra.mxu0 0.0
        %321 = vmatpush.msra.mxu0 0.0
        %322 = vmatpush.msra.mxu0 0.0
        %323 = vmatpush.msra.mxu0 %v310
        %324 = vmatpush.msra.mxu0 %v309
        %325 = vmatpush.msra.mxu0 %v308
        %326 = vmatpush.msra.mxu0 %v307
        %327 = vmatpush.msra.mxu0 %v306
        %328 = vmatpush.msra.mxu0 %v305
        %329 = vmatpush.msra.mxu0 %v304
        %330 = vmatpush.msra.mxu0 %v303
        %331 = vmatmul.f32.gmra.mxu0 %v313
        %v332 = vpop.f32.mrf.mxu0
        %v333 = vadd.f32 0.0, %v332
        %334 = vdwg.mxu0
        %p335 = scmp.eq.s32.totalorder %s22, 0
        // Predicated region
        $region33: #{tpu_custom_call.1} parent=31 // pred_check
          %p336 = pneg %p335
        $region34: #{tpu_custom_call.1} parent=31 // pred_check_branch
          %338 = sbr.rel (%p336) target = $region36
        $region35: #{tpu_custom_call.1} parent=31 // pred_region
          %339 = vst.msk [vmem:[%s202] sm:$0xff] %vm222, %v333
        $region36: #{tpu_custom_call.1} parent=31 // pred_fallthru
          _
        %p340 = scmp.gt.s32.totalorder %s22, 0
        // Predicated region
        $region37: #{tpu_custom_call.1} parent=31 // pred_check
          %p341 = pneg %p340
        $region38: #{tpu_custom_call.1} parent=31 // pred_check_branch
          %343 = sbr.rel (%p341) target = $region40
        $region39: #{tpu_custom_call.1} parent=31 // pred_region
          %v344 = vld [vmem:[%s202] sm:$0xff]
          %v345 = vadd.f32 %v344, %v333
          %346 = vst.msk [vmem:[%s202] sm:$0xff] %vm222, %v345
        $region40: #{tpu_custom_call.1} parent=31 // pred_fallthru
          _
        %s347 = sand.u32 %s115, 1
        %s348 = scalar_lea.sflag [#allocation3], %s347
        %s349 = sand.u32 %s115, 1
        %s350 = smul.addr %s349, 8
        %s351 = scalar_lea.vmem [#allocation2], %s350
        // Predicated region
        $region41: #{tpu_custom_call.1} parent=31 // pred_check
          %p352 = pneg %p125
        $region42: #{tpu_custom_call.1} parent=31 // pred_check_branch
          %354 = sbr.rel (%p352) target = $region44
        $region43: #{tpu_custom_call.1} parent=31 // pred_region
          %356 = vsyncadd %s348, 0
          %s357 = smul.addr %s21, 8
          %s358 = scalar_lea.hbm %s3, %s357
          %s360 = sshll.u32 %s351, 4
          %s361 = int_to_ptr.vmem [resolvable:$true] %s360
          %s362 = sshll.u32 %s358, 4
          %s363 = int_to_ptr.hbm [resolvable:$true] %s362
          %365 = dma.vmem_to_hbm [thread:$0]  %s361, 128, %s363, %s348
        $region44: #{tpu_custom_call.1} parent=31 // pred_fallthru
          _
      $region32: #{tpu_custom_call.1} parent=5 // pred_fallthru
        _
      %p366 = scmp.le.s32.totalorder 2, %s12
      // Predicated region
      $region45: #{tpu_custom_call.1} parent=5 // pred_check
        %p367 = pneg %p366
      $region46: #{tpu_custom_call.1} parent=5 // pred_check_branch
        %369 = sbr.rel (%p367) target = $region48
      $region47: #{tpu_custom_call.1} parent=5 // pred_region
        %s370 = ssub.s32 %s12, 2
        // Predicated region
        $region49: #{tpu_custom_call.1} parent=47 // pred_check
          %p371 = pneg %p131
        $region50: #{tpu_custom_call.1} parent=47 // pred_check_branch
          %373 = sbr.rel (%p371) target = $region52
        $region51: #{tpu_custom_call.1} parent=47 // pred_region
          %s374 = sand.u32 %s116, 1
          %s375 = scalar_lea.sflag [#allocation3], %s374
          %s376 = sand.u32 %s116, 1
          %s377 = smul.addr %s376, 8
          %s378 = scalar_lea.vmem [#allocation2], %s377
          %380 = dma.done %s375, 128
        $region52: #{tpu_custom_call.1} parent=47 // pred_fallthru
          _
      $region48: #{tpu_custom_call.1} parent=5 // pred_fallthru
        _
    $region6: #{tpu_custom_call.1} parent=1 // loop_footer
      %s16 = sadd.s32 1, %s12
    $region7: #{tpu_custom_call.1} parent=1 // loop_footer_branch
      %11 = sbr.rel target = $region3
    $region8: #{tpu_custom_call.1} parent=1 // loop_exit
      _
    %381 = vsyncpa [#allocation3], 1
    %s382 = scalar_lea.sflag [#allocation3], 1
    %383 = vsyncpa %s382, 1

</llo_original>
